<compile_context>
chip_gen: v7x
topology: tpu7x:2x2x1
jax: 0.10.0
libtpu: 0.0.40
codegen_flags: <defaults>
</compile_context>

<pallas_src>
import functools
import math

import jax
import jax.numpy as jnp
from jax import lax
from jax.experimental import pallas as pl
from jax.experimental.pallas import tpu as pltpu


def _round_up(a, b):
    return (a + b - 1) // b * b


def _ffn_ln_kernel(x_ref, w1_ref, b1_ref, w2_ref, b2_ref, g_ref, beta_ref,
                   o_ref, acc_ref, *, d_model, n_pad_cols, approx_gelu):
    k = pl.program_id(1)
    nk = pl.num_programs(1)

    @pl.when(k == 0)
    def _():
        acc_ref[...] = jnp.zeros_like(acc_ref)

    # ---- first matmul in native dtype, f32 accumulation ----
    x = x_ref[...]                                                    # (tm, d_pad)
    h = jnp.dot(x, w1_ref[...], preferred_element_type=jnp.float32)   # (tm, tk) f32
    h = h + b1_ref[...]                                               # f32 bias

    if approx_gelu:
        # tanh GELU -> EUP slot (free alongside MXU)
        h = 0.5 * h * (1.0 + jnp.tanh(0.7978845608028654 *
                                      (h + 0.044715 * h * h * h)))
    else:
        # exact erf GELU (matches nn.GELU() default)
        h = 0.5 * h * (1.0 + lax.erf(h * 0.7071067811865476))

    # ---- second matmul, accumulate over the d_ff grid axis ----
    h = h.astype(w2_ref.dtype)
    acc_ref[...] += jnp.dot(h, w2_ref[...], preferred_element_type=jnp.float32)

    # ---- epilogue: bias + residual + LayerNorm on the last K step ----
    @pl.when(k == nk - 1)
    def _():
        y = acc_ref[...] + b2_ref[...] + x.astype(jnp.float32)        # (tm, d_pad)
        inv_d = 1.0 / d_model
        # padded columns of y are exactly zero; correct the statistics.
        mean = jnp.sum(y, axis=-1, keepdims=True) * inv_d
        centered = y - mean
        ssq = jnp.sum(centered * centered, axis=-1, keepdims=True)
        if n_pad_cols:
            ssq = ssq - n_pad_cols * (mean * mean)
        var = ssq * inv_d
        out = centered * lax.rsqrt(var + 1e-5) * g_ref[...] + beta_ref[...]
        o_ref[...] = out.astype(o_ref.dtype)


def positionwise_feed_forward(x, w1, b1, w2, b2, gamma, beta, *,
                              row_tile=256, k_tile=512,
                              gelu_approximate=False,
                              vmem_limit_bytes=64 * 1024 * 1024):
    """x: (B, S, d_model). Weights stored (in, out) (transposed vs torch).
    w1/w2 may be bf16 (f32 accumulation is used); biases/gamma/beta are
    promoted to f32 inside the wrapper."""
    B, S, d_model = x.shape
    d_ff = w1.shape[1]
    rows = B * S

    # --- tiling / padding ---
    tm = _round_up(min(row_tile, rows), 8)            # row tile (sublane mult.)
    rows_p = _round_up(rows, tm)                      # padded row count
    d_pad = _round_up(d_model, 128)                   # lane-dense d_model
    tk = min(_round_up(k_tile, 128), _round_up(d_ff, 128))   # d_ff (K) tile
    dff_p = _round_up(d_ff, tk)                       # padded d_ff

    x2d = x.reshape(rows, d_model)
    if rows_p != rows or d_pad != d_model:
        x2d = jnp.pad(x2d, ((0, rows_p - rows), (0, d_pad - d_model)))
    w1p = jnp.pad(w1, ((0, d_pad - d_model), (0, dff_p - d_ff)))
    w2p = jnp.pad(w2, ((0, dff_p - d_ff), (0, d_pad - d_model)))
    b1p = jnp.pad(b1.astype(jnp.float32), (0, dff_p - d_ff)).reshape(1, dff_p)
    b2p = jnp.pad(b2.astype(jnp.float32), (0, d_pad - d_model)).reshape(1, d_pad)
    gp = jnp.pad(gamma.astype(jnp.float32), (0, d_pad - d_model)).reshape(1, d_pad)
    bp = jnp.pad(beta.astype(jnp.float32), (0, d_pad - d_model)).reshape(1, d_pad)

    grid = (rows_p // tm, dff_p // tk)

    kernel = functools.partial(_ffn_ln_kernel,
                               d_model=d_model,
                               n_pad_cols=d_pad - d_model,
                               approx_gelu=gelu_approximate)

    out2d = pl.pallas_call(
        kernel,
        out_shape=jax.ShapeDtypeStruct((rows_p, d_pad), x.dtype),
        grid_spec=pltpu.PrefetchScalarGridSpec(
            num_scalar_prefetch=0,
            grid=grid,
            in_specs=[
                pl.BlockSpec((tm, d_pad), lambda i, k: (i, 0)),    # x tile
                pl.BlockSpec((d_pad, tk), lambda i, k: (0, k)),    # W1 (K slab)
                pl.BlockSpec((1, tk), lambda i, k: (0, k)),        # b1 (K slab)
                pl.BlockSpec((tk, d_pad), lambda i, k: (k, 0)),    # W2 (K slab)
                pl.BlockSpec((1, d_pad), lambda i, k: (0, 0)),     # b2
                pl.BlockSpec((1, d_pad), lambda i, k: (0, 0)),     # gamma
                pl.BlockSpec((1, d_pad), lambda i, k: (0, 0)),     # beta
            ],
            out_specs=pl.BlockSpec((tm, d_pad), lambda i, k: (i, 0)),
            scratch_shapes=[pltpu.VMEM((tm, d_pad), jnp.float32)],
        ),
        compiler_params=pltpu.CompilerParams(
            dimension_semantics=("parallel", "arbitrary"),
            vmem_limit_bytes=vmem_limit_bytes,
        ),
    )(x2d, w1p, b1p, w2p, b2p, gp, bp)

    return out2d[:rows, :d_model].reshape(B, S, d_model)


def _init_params(key, d_model, d_ff, dtype=jnp.float32):
    """Deterministic init mimicking torch nn.Linear (kaiming-uniform-ish bounds).
    Weights stored as (in, out) so the kernel can do x @ W directly."""
    k1, k2, k3, k4 = jax.random.split(key, 4)
    bnd1 = 1.0 / math.sqrt(d_model)
    bnd2 = 1.0 / math.sqrt(d_ff)
    w1 = jax.random.uniform(k1, (d_model, d_ff), dtype, -bnd1, bnd1)
    b1 = jax.random.uniform(k2, (d_ff,), dtype, -bnd1, bnd1)
    w2 = jax.random.uniform(k3, (d_ff, d_model), dtype, -bnd2, bnd2)
    b2 = jax.random.uniform(k4, (d_model,), dtype, -bnd2, bnd2)
    gamma = jnp.ones((d_model,), dtype)
    beta = jnp.zeros((d_model,), dtype)
    return w1, b1, w2, b2, gamma, beta


def _reference(x, w1, b1, w2, b2, gamma, beta):
    x = x.astype(jnp.float32)
    h = x @ w1.astype(jnp.float32) + b1
    h = 0.5 * h * (1.0 + lax.erf(h / jnp.sqrt(2.0)))
    y = h @ w2.astype(jnp.float32) + b2 + x
    mean = jnp.mean(y, axis=-1, keepdims=True)
    var = jnp.mean((y - mean) ** 2, axis=-1, keepdims=True)
    return (y - mean) * lax.rsqrt(var + 1e-5) * gamma + beta


if __name__ == "__main__":
    d_model, d_ff = 32, 128
    B, S = 2, 8

    key = jax.random.PRNGKey(0)
    kx, kp = jax.random.split(key)
    x = jax.random.normal(kx, (B, S, d_model), jnp.float32)
    w1, b1, w2, b2, gamma, beta = _init_params(kp, d_model, d_ff)

    # --- f32 path: exact match against the reference ---
    out = positionwise_feed_forward(x, w1, b1, w2, b2, gamma, beta)
    out = jax.block_until_ready(out)
    ref = _reference(x, w1, b1, w2, b2, gamma, beta)
    assert out.shape == (B, S, d_model)
    assert jnp.allclose(out, ref, atol=1e-4, rtol=1e-4), "f32 mismatch vs reference"

    # --- bf16 matmul-operand path (f32 accumulation), loose check ---
    out_bf16 = positionwise_feed_forward(
        x.astype(jnp.bfloat16),
        w1.astype(jnp.bfloat16), b1,
        w2.astype(jnp.bfloat16), b2,
        gamma, beta)
    out_bf16 = jax.block_until_ready(out_bf16)
    assert out_bf16.shape == (B, S, d_model)
    assert bool(jnp.all(jnp.isfinite(out_bf16.astype(jnp.float32))))
    assert jnp.allclose(out_bf16.astype(jnp.float32), ref, atol=0.15, rtol=0.1), \
        "bf16 path drifted too far from reference"

    print("KERNEL_OK")
</pallas_src>

<mosaic_0001>
module attributes {stable_mosaic.version = 11 : i64} {
  func.func @_ffn_ln_kernel(%arg0: i32, %arg1: i32, %arg2: memref<16x128xf32, #tpu.memory_space<vmem>>, %arg3: memref<128x128xf32, #tpu.memory_space<vmem>>, %arg4: memref<1x128xf32, #tpu.memory_space<vmem>>, %arg5: memref<128x128xf32, #tpu.memory_space<vmem>>, %arg6: memref<1x128xf32, #tpu.memory_space<vmem>>, %arg7: memref<1x128xf32, #tpu.memory_space<vmem>>, %arg8: memref<1x128xf32, #tpu.memory_space<vmem>>, %arg9: memref<16x128xf32, #tpu.memory_space<vmem>>, %arg10: memref<16x128xf32, #tpu.memory_space<vmem>>) attributes {dimension_semantics = [#tpu.dimension_semantics<parallel>, #tpu.dimension_semantics<arbitrary>], iteration_bounds = array<i64: 1, 1>, scalar_prefetch = 0 : i64, scratch_operands = 1 : i64, tpu.core_type = #tpu.core_type<tc>, window_params = [{transform_indices = @transform_0, window_bounds = array<i64: 16, 128>}, {transform_indices = @transform_1, window_bounds = array<i64: 128, 128>}, {transform_indices = @transform_2, window_bounds = array<i64: 1, 128>}, {transform_indices = @transform_3, window_bounds = array<i64: 128, 128>}, {pipeline_mode = #tpu.pipeline_mode<synchronous>, transform_indices = @transform_4, window_bounds = array<i64: 1, 128>}, {pipeline_mode = #tpu.pipeline_mode<synchronous>, transform_indices = @transform_5, window_bounds = array<i64: 1, 128>}, {pipeline_mode = #tpu.pipeline_mode<synchronous>, transform_indices = @transform_6, window_bounds = array<i64: 1, 128>}, {transform_indices = @transform_7, window_bounds = array<i64: 16, 128>}]} {
    %c0_i32 = arith.constant 0 : i32
    %0 = arith.cmpi eq, %arg1, %c0_i32 : i32
    %1 = arith.extui %0 : i1 to i32
    %c0_i32_0 = arith.constant 0 : i32
    %2 = arith.cmpi ne, %1, %c0_i32_0 : i32
    scf.if %2 {
      %cst_18 = arith.constant 0.000000e+00 : f32
      %25 = vector.broadcast %cst_18 : f32 to vector<16x128xf32>
      %c0_19 = arith.constant 0 : index
      %c0_20 = arith.constant 0 : index
      %26 = vector.load %arg10[%c0_19, %c0_20] : memref<16x128xf32, #tpu.memory_space<vmem>>, vector<16x128xf32>
      tpu.vector_store %arg10[%c0_19, %c0_20], %25 {strides = array<i32>} : memref<16x128xf32, #tpu.memory_space<vmem>>, vector<16x128xf32>,
    } else {
    }
    %c0 = arith.constant 0 : index
    %c0_1 = arith.constant 0 : index
    %3 = vector.load %arg2[%c0, %c0_1] : memref<16x128xf32, #tpu.memory_space<vmem>>, vector<16x128xf32>
    %c0_2 = arith.constant 0 : index
    %c0_3 = arith.constant 0 : index
    %4 = vector.load %arg3[%c0_2, %c0_3] : memref<128x128xf32, #tpu.memory_space<vmem>>, vector<128x128xf32>
    %cst = arith.constant dense<0.000000e+00> : vector<16x128xf32>
    %5 = tpu.matmul %3, %4, %cst {dimension_numbers = #tpu.dot_dimension_numbers<[1], [0], [0], [1], [0, 0, 1, 1], [], []>} : vector<16x128xf32>, vector<128x128xf32>, vector<16x128xf32> -> vector<16x128xf32>
    %c0_4 = arith.constant 0 : index
    %c0_5 = arith.constant 0 : index
    %6 = vector.load %arg4[%c0_4, %c0_5] : memref<1x128xf32, #tpu.memory_space<vmem>>, vector<1x128xf32>
    %7 = vector.broadcast %6 : vector<1x128xf32> to vector<16x128xf32>
    %8 = arith.addf %5, %7 : vector<16x128xf32>
    %cst_6 = arith.constant 5.000000e-01 : f32
    %9 = vector.broadcast %cst_6 : f32 to vector<16x128xf32>
    %10 = arith.mulf %9, %8 : vector<16x128xf32>
    %cst_7 = arith.constant 0.707106769 : f32
    %11 = vector.broadcast %cst_7 : f32 to vector<16x128xf32>
    %12 = arith.mulf %8, %11 : vector<16x128xf32>
    %13 = math.erf %12 : vector<16x128xf32>
    %cst_8 = arith.constant 1.000000e+00 : f32
    %14 = vector.broadcast %cst_8 : f32 to vector<16x128xf32>
    %15 = arith.addf %14, %13 : vector<16x128xf32>
    %16 = arith.mulf %10, %15 : vector<16x128xf32>
    %c0_9 = arith.constant 0 : index
    %c0_10 = arith.constant 0 : index
    %17 = vector.load %arg10[%c0_9, %c0_10] : memref<16x128xf32, #tpu.memory_space<vmem>>, vector<16x128xf32>
    %c0_11 = arith.constant 0 : index
    %c0_12 = arith.constant 0 : index
    %18 = vector.load %arg5[%c0_11, %c0_12] : memref<128x128xf32, #tpu.memory_space<vmem>>, vector<128x128xf32>
    %cst_13 = arith.constant dense<0.000000e+00> : vector<16x128xf32>
    %19 = tpu.matmul %16, %18, %cst_13 {dimension_numbers = #tpu.dot_dimension_numbers<[1], [0], [0], [1], [0, 0, 1, 1], [], []>} : vector<16x128xf32>, vector<128x128xf32>, vector<16x128xf32> -> vector<16x128xf32>
    %20 = arith.addf %17, %19 : vector<16x128xf32>
    %c0_14 = arith.constant 0 : index
    %c0_15 = arith.constant 0 : index
    %21 = vector.load %arg10[%c0_14, %c0_15] : memref<16x128xf32, #tpu.memory_space<vmem>>, vector<16x128xf32>
    tpu.vector_store %arg10[%c0_14, %c0_15], %20 {strides = array<i32>} : memref<16x128xf32, #tpu.memory_space<vmem>>, vector<16x128xf32>,
    %c0_i32_16 = arith.constant 0 : i32
    %22 = arith.cmpi eq, %arg1, %c0_i32_16 : i32
    %23 = arith.extui %22 : i1 to i32
    %c0_i32_17 = arith.constant 0 : i32
    %24 = arith.cmpi ne, %23, %c0_i32_17 : i32
    scf.if %24 {
      %c0_18 = arith.constant 0 : index
      %c0_19 = arith.constant 0 : index
      %25 = vector.load %arg10[%c0_18, %c0_19] : memref<16x128xf32, #tpu.memory_space<vmem>>, vector<16x128xf32>
      %c0_20 = arith.constant 0 : index
      %c0_21 = arith.constant 0 : index
      %26 = vector.load %arg6[%c0_20, %c0_21] : memref<1x128xf32, #tpu.memory_space<vmem>>, vector<1x128xf32>
      %27 = vector.broadcast %26 : vector<1x128xf32> to vector<16x128xf32>
      %28 = arith.addf %25, %27 : vector<16x128xf32>
      %29 = arith.addf %28, %3 : vector<16x128xf32>
      %cst_22 = arith.constant dense<0.000000e+00> : vector<16xf32>
      %30 = vector.multi_reduction <add>, %29, %cst_22 [1] : vector<16x128xf32> to vector<16xf32>
      %31 = vector.shape_cast %30 : vector<16xf32> to vector<16x1xf32>
      %cst_23 = arith.constant 3.125000e-02 : f32
      %32 = vector.broadcast %cst_23 : f32 to vector<16x1xf32>
      %33 = arith.mulf %31, %32 : vector<16x1xf32>
      %34 = vector.broadcast %33 : vector<16x1xf32> to vector<16x128xf32>
      %35 = arith.subf %29, %34 : vector<16x128xf32>
      %36 = arith.mulf %35, %35 : vector<16x128xf32>
      %cst_24 = arith.constant dense<0.000000e+00> : vector<16xf32>
      %37 = vector.multi_reduction <add>, %36, %cst_24 [1] : vector<16x128xf32> to vector<16xf32>
      %38 = vector.shape_cast %37 : vector<16xf32> to vector<16x1xf32>
      %39 = arith.mulf %33, %33 : vector<16x1xf32>
      %cst_25 = arith.constant 9.600000e+01 : f32
      %40 = vector.broadcast %cst_25 : f32 to vector<16x1xf32>
      %41 = arith.mulf %40, %39 : vector<16x1xf32>
      %42 = arith.subf %38, %41 : vector<16x1xf32>
      %cst_26 = arith.constant 3.125000e-02 : f32
      %43 = vector.broadcast %cst_26 : f32 to vector<16x1xf32>
      %44 = arith.mulf %42, %43 : vector<16x1xf32>
      %cst_27 = arith.constant 9.99999974E-6 : f32
      %45 = vector.broadcast %cst_27 : f32 to vector<16x1xf32>
      %46 = arith.addf %44, %45 : vector<16x1xf32>
      %47 = math.rsqrt %46 : vector<16x1xf32>
      %48 = vector.broadcast %47 : vector<16x1xf32> to vector<16x128xf32>
      %49 = arith.mulf %35, %48 : vector<16x128xf32>
      %c0_28 = arith.constant 0 : index
      %c0_29 = arith.constant 0 : index
      %50 = vector.load %arg7[%c0_28, %c0_29] : memref<1x128xf32, #tpu.memory_space<vmem>>, vector<1x128xf32>
      %51 = vector.broadcast %50 : vector<1x128xf32> to vector<16x128xf32>
      %52 = arith.mulf %49, %51 : vector<16x128xf32>
      %c0_30 = arith.constant 0 : index
      %c0_31 = arith.constant 0 : index
      %53 = vector.load %arg8[%c0_30, %c0_31] : memref<1x128xf32, #tpu.memory_space<vmem>>, vector<1x128xf32>
      %54 = vector.broadcast %53 : vector<1x128xf32> to vector<16x128xf32>
      %55 = arith.addf %52, %54 : vector<16x128xf32>
      %c0_32 = arith.constant 0 : index
      %c0_33 = arith.constant 0 : index
      %56 = vector.load %arg9[%c0_32, %c0_33] : memref<16x128xf32, #tpu.memory_space<vmem>>, vector<16x128xf32>
      tpu.vector_store %arg9[%c0_32, %c0_33], %55 {strides = array<i32>} : memref<16x128xf32, #tpu.memory_space<vmem>>, vector<16x128xf32>,
    } else {
    }
    return
  }
  func.func @transform_0(%arg0: i32, %arg1: i32) -> (i32, i32) {
    %c0_i32 = arith.constant 0 : i32
    %c0_i32_0 = arith.constant 0 : i32
    return %arg0, %c0_i32 : i32, i32
  }
  func.func @transform_1(%arg0: i32, %arg1: i32) -> (i32, i32) {
    %c0_i32 = arith.constant 0 : i32
    %c0_i32_0 = arith.constant 0 : i32
    return %c0_i32, %arg1 : i32, i32
  }
  func.func @transform_2(%arg0: i32, %arg1: i32) -> (i32, i32) {
    %c0_i32 = arith.constant 0 : i32
    %c0_i32_0 = arith.constant 0 : i32
    return %c0_i32, %arg1 : i32, i32
  }
  func.func @transform_3(%arg0: i32, %arg1: i32) -> (i32, i32) {
    %c0_i32 = arith.constant 0 : i32
    %c0_i32_0 = arith.constant 0 : i32
    return %arg1, %c0_i32 : i32, i32
  }
  func.func @transform_4(%arg0: i32, %arg1: i32) -> (i32, i32) {
    %c0_i32 = arith.constant 0 : i32
    %c0_i32_0 = arith.constant 0 : i32
    %c0_i32_1 = arith.constant 0 : i32
    return %c0_i32, %c0_i32_0 : i32, i32
  }
  func.func @transform_5(%arg0: i32, %arg1: i32) -> (i32, i32) {
    %c0_i32 = arith.constant 0 : i32
    %c0_i32_0 = arith.constant 0 : i32
    %c0_i32_1 = arith.constant 0 : i32
    return %c0_i32, %c0_i32_0 : i32, i32
  }
  func.func @transform_6(%arg0: i32, %arg1: i32) -> (i32, i32) {
    %c0_i32 = arith.constant 0 : i32
    %c0_i32_0 = arith.constant 0 : i32
    %c0_i32_1 = arith.constant 0 : i32
    return %c0_i32, %c0_i32_0 : i32, i32
  }
  func.func @transform_7(%arg0: i32, %arg1: i32) -> (i32, i32) {
    %c0_i32 = arith.constant 0 : i32
    %c0_i32_0 = arith.constant 0 : i32
    return %arg0, %c0_i32 : i32, i32
  }
}

</mosaic_0001>

<llo_original>
// kernel: tpu_custom_call.1
$region0: #{tpu_custom_call.1}
  #allocation0 [shape = 'u32[]', space=smem, size = 0x4, offset = 0x4, fixed_abs, tag = 'smem constant byte address 0x4 - core index']
  #allocation1 [shape = 'u32[144,128]{1,0:T(1,128)}', space=vmem, size = 0x12000, scoped, tag = 'internal scratch']
  #allocation2 [shape = 'f32[16,128]{1,0:T(8,128)}', space=vmem, size = 0x2000, scoped, tag = 'scratch operand']
  %s0 = inlined_call_operand.hbm [shape: f32[16,128], index: 0, kind: input, shape index: {}]
  %s1 = inlined_call_operand.hbm [shape: f32[128,128], index: 1, kind: input, shape index: {}]
  %s2 = inlined_call_operand.hbm [shape: f32[1,128], index: 2, kind: input, shape index: {}]
  %s3 = inlined_call_operand.hbm [shape: f32[128,128], index: 3, kind: input, shape index: {}]
  %s4 = inlined_call_operand.hbm [shape: f32[1,128], index: 4, kind: input, shape index: {}]
  %s5 = inlined_call_operand.hbm [shape: f32[1,128], index: 5, kind: input, shape index: {}]
  %s6 = inlined_call_operand.hbm [shape: f32[1,128], index: 6, kind: input, shape index: {}]
  %s7 = inlined_call_operand.hbm [shape: f32[16,128], index: 7, kind: output, shape index: {}]
  %s8 = sld [smem:[#allocation0]]
  $region74: #{tpu_custom_call.1} parent=0
    _
  %s10 = ssub.s32 1, %s8
  %s11 = scalar_select 0, %s10, %s8
  $region1: #{tpu_custom_call.1} parent=0
    #allocation3 [shape = 'u8[8192]{0}', space=vmem, size = 0x2000, scoped, tag = 'input window, operand 0, single buffered']
    #allocation4 [shape = 's32[1]{0}', space=sflag, size = 0x4, scoped, tag = 'scoped memory for tpu_custom_call.1']
    #allocation5 [shape = 's32[1]{0}', space=sflag, size = 0x4, scoped, tag = 'scoped memory for tpu_custom_call.1']
    #allocation6 [shape = 'u8[65536]{0}', space=vmem, size = 0x10000, scoped, tag = 'input window, operand 1, single buffered']
    #allocation7 [shape = 's32[1]{0}', space=sflag, size = 0x4, scoped, tag = 'scoped memory for tpu_custom_call.1']
    #allocation8 [shape = 'u8[512]{0}', space=vmem, size = 0x400, scoped, tag = 'input window, operand 2, single buffered']
    #allocation9 [shape = 'u8[65536]{0}', space=vmem, size = 0x10000, scoped, tag = 'input window, operand 3, single buffered']
    #allocation10 [shape = 's32[1]{0}', space=sflag, size = 0x4, scoped, tag = 'scoped memory for tpu_custom_call.1']
    #allocation11 [shape = 'u8[512]{0}', space=vmem, size = 0x400, scoped, tag = 'input window, operand 4, single buffered']
    #allocation12 [shape = 'u8[512]{0}', space=vmem, size = 0x400, scoped, tag = 'input window, operand 5, single buffered']
    #allocation13 [shape = 's32[1]{0}', space=sflag, size = 0x4, scoped, tag = 'scoped memory for tpu_custom_call.1']
    #allocation14 [shape = 'u8[512]{0}', space=vmem, size = 0x400, scoped, tag = 'input window, operand 6, single buffered']
    #allocation15 [shape = 'u8[8192]{0}', space=vmem, size = 0x2000, scoped, tag = 'output window, operand 0, single buffered']
    %12 = vsyncpa [#allocation4], 0
    %13 = vsyncpa [#allocation7], 0
    %14 = vsyncpa [#allocation10], 0
    %15 = vsyncpa [#allocation13], 0
    %16 = vsyncpa [#allocation5], 0
    // Predicated region
    $region2: #{tpu_custom_call.1} parent=1 // pred_check
      _
    $region3: #{tpu_custom_call.1} parent=1 // pred_check_branch
      %18 = sbr.rel (0) target = $region5
    $region4: #{tpu_custom_call.1} parent=1 // pred_region
      %s20 = ssub.s32 256, 256
      %21 = vsyncadd [#allocation4], %s20
      %s22 = sshll.u32 [#allocation3], 4
      %s23 = int_to_ptr.vmem [resolvable:$true] %s22
      %28 = dma.hbm_to_vmem [thread:$0]  %s0, 256, %s23, [#allocation4], 128, 128, 8
    $region5: #{tpu_custom_call.1} parent=1 // pred_fallthru
      _
    // Predicated region
    $region6: #{tpu_custom_call.1} parent=1 // pred_check
      _
    $region7: #{tpu_custom_call.1} parent=1 // pred_check_branch
      %30 = sbr.rel (0) target = $region9
    $region8: #{tpu_custom_call.1} parent=1 // pred_region
      %s32 = ssub.s32 2048, 2048
      %33 = vsyncadd [#allocation7], %s32
      %s34 = sshll.u32 [#allocation6], 4
      %s35 = int_to_ptr.vmem [resolvable:$true] %s34
      %40 = dma.hbm_to_vmem [thread:$0]  %s1, 2048, %s35, [#allocation7], 128, 128, 8
    $region9: #{tpu_custom_call.1} parent=1 // pred_fallthru
      _
    // Predicated region
    $region10: #{tpu_custom_call.1} parent=1 // pred_check
      _
    $region11: #{tpu_custom_call.1} parent=1 // pred_check_branch
      %42 = sbr.rel (0) target = $region13
    $region12: #{tpu_custom_call.1} parent=1 // pred_region
      %s44 = ssub.s32 16, 16
      %45 = vsyncadd [#allocation7], %s44
      %s47 = sshll.u32 [#allocation8], 4
      %s48 = int_to_ptr.vmem [resolvable:$true] %s47
      %50 = dma.hbm_to_vmem [thread:$0]  %s2, 16, %s48, [#allocation7]
    $region13: #{tpu_custom_call.1} parent=1 // pred_fallthru
      _
    // Predicated region
    $region14: #{tpu_custom_call.1} parent=1 // pred_check
      _
    $region15: #{tpu_custom_call.1} parent=1 // pred_check_branch
      %52 = sbr.rel (0) target = $region17
    $region16: #{tpu_custom_call.1} parent=1 // pred_region
      %s54 = ssub.s32 2048, 2048
      %55 = vsyncadd [#allocation10], %s54
      %s56 = sshll.u32 [#allocation9], 4
      %s57 = int_to_ptr.vmem [resolvable:$true] %s56
      %62 = dma.hbm_to_vmem [thread:$0]  %s3, 2048, %s57, [#allocation10], 128, 128, 8
    $region17: #{tpu_custom_call.1} parent=1 // pred_fallthru
      _
    // Predicated region
    $region18: #{tpu_custom_call.1} parent=1 // pred_check
      _
    $region19: #{tpu_custom_call.1} parent=1 // pred_check_branch
      %64 = sbr.rel (0) target = $region21
    $region20: #{tpu_custom_call.1} parent=1 // pred_region
      %s66 = ssub.s32 16, 16
      %67 = vsyncadd [#allocation10], %s66
      %s69 = sshll.u32 [#allocation11], 4
      %s70 = int_to_ptr.vmem [resolvable:$true] %s69
      %72 = dma.hbm_to_vmem [thread:$0]  %s4, 16, %s70, [#allocation10]
    $region21: #{tpu_custom_call.1} parent=1 // pred_fallthru
      _
    // Predicated region
    $region22: #{tpu_custom_call.1} parent=1 // pred_check
      _
    $region23: #{tpu_custom_call.1} parent=1 // pred_check_branch
      %74 = sbr.rel (0) target = $region25
    $region24: #{tpu_custom_call.1} parent=1 // pred_region
      %s76 = ssub.s32 16, 16
      %77 = vsyncadd [#allocation13], %s76
      %s79 = sshll.u32 [#allocation12], 4
      %s80 = int_to_ptr.vmem [resolvable:$true] %s79
      %82 = dma.hbm_to_vmem [thread:$0]  %s5, 16, %s80, [#allocation13]
    $region25: #{tpu_custom_call.1} parent=1 // pred_fallthru
      _
    // Predicated region
    $region26: #{tpu_custom_call.1} parent=1 // pred_check
      _
    $region27: #{tpu_custom_call.1} parent=1 // pred_check_branch
      %84 = sbr.rel (0) target = $region29
    $region28: #{tpu_custom_call.1} parent=1 // pred_region
      %s86 = ssub.s32 16, 16
      %87 = vsyncadd [#allocation13], %s86
      %s89 = sshll.u32 [#allocation14], 4
      %s90 = int_to_ptr.vmem [resolvable:$true] %s89
      %92 = dma.hbm_to_vmem [thread:$0]  %s6, 16, %s90, [#allocation13]
    $region29: #{tpu_custom_call.1} parent=1 // pred_fallthru
      _
    // Predicated region
    $region30: #{tpu_custom_call.1} parent=1 // pred_check
      _
    $region31: #{tpu_custom_call.1} parent=1 // pred_check_branch
      %94 = sbr.rel (0) target = $region33
    $region32: #{tpu_custom_call.1} parent=1 // pred_region
      %95 = dma.done [#allocation4], 256
    $region33: #{tpu_custom_call.1} parent=1 // pred_fallthru
      _
    // Predicated region
    $region34: #{tpu_custom_call.1} parent=1 // pred_check
      _
    $region35: #{tpu_custom_call.1} parent=1 // pred_check_branch
      %97 = sbr.rel (0) target = $region37
    $region36: #{tpu_custom_call.1} parent=1 // pred_region
      %98 = dma.done [#allocation7], 2048
    $region37: #{tpu_custom_call.1} parent=1 // pred_fallthru
      _
    // Predicated region
    $region38: #{tpu_custom_call.1} parent=1 // pred_check
      _
    $region39: #{tpu_custom_call.1} parent=1 // pred_check_branch
      %100 = sbr.rel (0) target = $region41
    $region40: #{tpu_custom_call.1} parent=1 // pred_region
      %101 = dma.done [#allocation7], 16
    $region41: #{tpu_custom_call.1} parent=1 // pred_fallthru
      _
    // Predicated region
    $region42: #{tpu_custom_call.1} parent=1 // pred_check
      _
    $region43: #{tpu_custom_call.1} parent=1 // pred_check_branch
      %103 = sbr.rel (0) target = $region45
    $region44: #{tpu_custom_call.1} parent=1 // pred_region
      %104 = dma.done [#allocation10], 2048
    $region45: #{tpu_custom_call.1} parent=1 // pred_fallthru
      _
    // Predicated region
    $region46: #{tpu_custom_call.1} parent=1 // pred_check
      _
    $region47: #{tpu_custom_call.1} parent=1 // pred_check_branch
      %106 = sbr.rel (0) target = $region49
    $region48: #{tpu_custom_call.1} parent=1 // pred_region
      %107 = dma.done [#allocation10], 16
    $region49: #{tpu_custom_call.1} parent=1 // pred_fallthru
      _
    // Predicated region
    $region50: #{tpu_custom_call.1} parent=1 // pred_check
      _
    $region51: #{tpu_custom_call.1} parent=1 // pred_check_branch
      %109 = sbr.rel (0) target = $region53
    $region52: #{tpu_custom_call.1} parent=1 // pred_region
      %110 = dma.done [#allocation13], 16
    $region53: #{tpu_custom_call.1} parent=1 // pred_fallthru
      _
    // Predicated region
    $region54: #{tpu_custom_call.1} parent=1 // pred_check
      _
    $region55: #{tpu_custom_call.1} parent=1 // pred_check_branch
      %112 = sbr.rel (0) target = $region57
    $region56: #{tpu_custom_call.1} parent=1 // pred_region
      %113 = dma.done [#allocation13], 16
    $region57: #{tpu_custom_call.1} parent=1 // pred_fallthru
      _
    %p114 = scmp.eq.s32.totalorder 0, 0
    // Predicated region
    $region58: #{tpu_custom_call.1} parent=1 // pred_check
      %p115 = pneg %p114
    $region59: #{tpu_custom_call.1} parent=1 // pred_check_branch
      %117 = sbr.rel (%p115) target = $region61
    $region60: #{tpu_custom_call.1} parent=1 // pred_region
      %118 = vst [vmem:[#allocation2] sm:$0xff] 0.0
      %119 = vst [vmem:[#allocation2 + $0x8] sm:$0xff] 0.0
    $region61: #{tpu_custom_call.1} parent=1 // pred_fallthru
      _
    %v120 = vld [vmem:[#allocation3] sm:$0xff]
    %v121 = vld [vmem:[#allocation3 + $0x8] sm:$0xff]
    %v122 = vld [vmem:[#allocation6] sm:$0xff]
    %v123 = vld [vmem:[#allocation6 + $0x8] sm:$0xff]
    %v124 = vld [vmem:[#allocation6 + $0x10] sm:$0xff]
    %v125 = vld [vmem:[#allocation6 + $0x18] sm:$0xff]
    %v126 = vld [vmem:[#allocation6 + $0x20] sm:$0xff]
    %v127 = vld [vmem:[#allocation6 + $0x28] sm:$0xff]
    %v128 = vld [vmem:[#allocation6 + $0x30] sm:$0xff]
    %v129 = vld [vmem:[#allocation6 + $0x38] sm:$0xff]
    %v130 = vld [vmem:[#allocation6 + $0x40] sm:$0xff]
    %v131 = vld [vmem:[#allocation6 + $0x48] sm:$0xff]
    %v132 = vld [vmem:[#allocation6 + $0x50] sm:$0xff]
    %v133 = vld [vmem:[#allocation6 + $0x58] sm:$0xff]
    %v134 = vld [vmem:[#allocation6 + $0x60] sm:$0xff]
    %v135 = vld [vmem:[#allocation6 + $0x68] sm:$0xff]
    %v136 = vld [vmem:[#allocation6 + $0x70] sm:$0xff]
    %v137 = vld [vmem:[#allocation6 + $0x78] sm:$0xff]
    %v138 = vld [vmem:[#allocation8] sm:$0x1]
    %v140 = vlaneseq
    %v141 = vshrl.u32 %v140, 7
    %v142 = vsub.s32 0, %v141
    %v143 = vrot.slane %v138, %v142
    %145 = vmatprep.subr.mxu0 0.0
    %146 = vmatpush1.msra.mxu0 %v122
    %147 = vmatprep.subr.mxu0 0.0
    %148 = vmatpush1.msra.mxu0 %v123
    %149 = vmatprep.subr.mxu0 0.0
    %150 = vmatpush1.msra.mxu0 %v124
    %151 = vmatprep.subr.mxu0 0.0
    %152 = vmatpush1.msra.mxu0 %v125
    %153 = vmatprep.subr.mxu0 0.0
    %154 = vmatpush1.msra.mxu0 %v126
    %155 = vmatprep.subr.mxu0 0.0
    %156 = vmatpush1.msra.mxu0 %v127
    %157 = vmatprep.subr.mxu0 0.0
    %158 = vmatpush1.msra.mxu0 %v128
    %159 = vmatprep.subr.mxu0 0.0
    %160 = vmatpush1.msra.mxu0 %v129
    %161 = vmatprep.subr.mxu0 0.0
    %162 = vmatpush1.msra.mxu0 %v130
    %163 = vmatprep.subr.mxu0 0.0
    %164 = vmatpush1.msra.mxu0 %v131
    %165 = vmatprep.subr.mxu0 0.0
    %166 = vmatpush1.msra.mxu0 %v132
    %167 = vmatprep.subr.mxu0 0.0
    %168 = vmatpush1.msra.mxu0 %v133
    %169 = vmatprep.subr.mxu0 0.0
    %170 = vmatpush1.msra.mxu0 %v134
    %171 = vmatprep.subr.mxu0 0.0
    %172 = vmatpush1.msra.mxu0 %v135
    %173 = vmatprep.subr.mxu0 0.0
    %174 = vmatpush1.msra.mxu0 %v136
    %175 = vmatprep.subr.mxu0 0.0
    %176 = vmatpush1.msra.mxu0 %v137
    %177 = vmatprep.subr.mxu0 0.0
    %178 = vmatpush1.msra.mxu0 0.0
    %179 = vmatprep.subr.mxu0 0.0
    %180 = vmatpush1.msra.mxu0 0.0
    %181 = vmatprep.subr.mxu0 0.0
    %182 = vmatpush1.msra.mxu0 0.0
    %183 = vmatprep.subr.mxu0 0.0
    %184 = vmatpush1.msra.mxu0 0.0
    %185 = vmatprep.subr.mxu0 0.0
    %186 = vmatpush1.msra.mxu0 0.0
    %187 = vmatprep.subr.mxu0 0.0
    %188 = vmatpush1.msra.mxu0 0.0
    %189 = vmatprep.subr.mxu0 0.0
    %190 = vmatpush1.msra.mxu0 0.0
    %191 = vmatprep.subr.mxu0 0.0
    %192 = vmatpush1.msra.mxu0 0.0
    %193 = vmatprep.subr.mxu0 0.0
    %194 = vmatpush1.msra.mxu0 0.0
    %195 = vmatprep.subr.mxu0 0.0
    %196 = vmatpush1.msra.mxu0 0.0
    %197 = vmatprep.subr.mxu0 0.0
    %198 = vmatpush1.msra.mxu0 0.0
    %199 = vmatprep.subr.mxu0 0.0
    %200 = vmatpush1.msra.mxu0 0.0
    %201 = vmatprep.subr.mxu0 0.0
    %202 = vmatpush1.msra.mxu0 0.0
    %203 = vmatprep.subr.mxu0 0.0
    %204 = vmatpush1.msra.mxu0 0.0
    %205 = vmatprep.subr.mxu0 0.0
    %206 = vmatpush1.msra.mxu0 0.0
    %207 = vmatprep.subr.mxu0 0.0
    %208 = vmatpush1.msra.mxu0 0.0
    %209 = vmatprep.mubr.f32.mxu0 0.0
    %210 = vmatmul.mubr.f32.gmra.mrb[0].mxu0 %v120
    %v211 = vpop.f32.mrb[0].mxu0
    %v212 = vadd.f32 %v143, %v211
    %v213 = vpop.f32.mrb[0].mxu0
    %214 = vmatprep.mubr.f32.mxu0 0.0
    %215 = vmatmul.mubr.f32.gmra.mrb[0].mxu0 %v121
    %v216 = vpop.f32.mrb[0].mxu0
    %v217 = vadd.f32 %v143, %v216
    %v218 = vpop.f32.mrb[0].mxu0
    %219 = vdwg.mxu0
    %v220 = vmul.f32 %v212, 0.5
    %v221 = vmul.f32 %v217, 0.5
    %v222 = vmul.f32 %v212, 0.70710677
    %v223 = vmul.f32 %v217, 0.70710677
    %v224 = verf.f32.pop %v222
    %v225 = verf.f32.pop %v223
    %v226 = vadd.f32 %v224, 1.0
    %v227 = vadd.f32 %v225, 1.0
    %v228 = vmul.f32 %v220, %v226
    %v229 = vmul.f32 %v221, %v227
    %v230 = vld [vmem:[#allocation2] sm:$0xff]
    %v231 = vld [vmem:[#allocation2 + $0x8] sm:$0xff]
    %v232 = vld [vmem:[#allocation9] sm:$0xff]
    %v233 = vld [vmem:[#allocation9 + $0x8] sm:$0xff]
    %v234 = vld [vmem:[#allocation9 + $0x10] sm:$0xff]
    %v235 = vld [vmem:[#allocation9 + $0x18] sm:$0xff]
    %v236 = vld [vmem:[#allocation9 + $0x20] sm:$0xff]
    %v237 = vld [vmem:[#allocation9 + $0x28] sm:$0xff]
    %v238 = vld [vmem:[#allocation9 + $0x30] sm:$0xff]
    %v239 = vld [vmem:[#allocation9 + $0x38] sm:$0xff]
    %v240 = vld [vmem:[#allocation9 + $0x40] sm:$0xff]
    %v241 = vld [vmem:[#allocation9 + $0x48] sm:$0xff]
    %v242 = vld [vmem:[#allocation9 + $0x50] sm:$0xff]
    %v243 = vld [vmem:[#allocation9 + $0x58] sm:$0xff]
    %v244 = vld [vmem:[#allocation9 + $0x60] sm:$0xff]
    %v245 = vld [vmem:[#allocation9 + $0x68] sm:$0xff]
    %v246 = vld [vmem:[#allocation9 + $0x70] sm:$0xff]
    %v247 = vld [vmem:[#allocation9 + $0x78] sm:$0xff]
    %248 = vmatprep.subr.mxu0 0.0
    %249 = vmatpush1.msra.mxu0 %v232
    %250 = vmatprep.subr.mxu0 0.0
    %251 = vmatpush1.msra.mxu0 %v233
    %252 = vmatprep.subr.mxu0 0.0
    %253 = vmatpush1.msra.mxu0 %v234
    %254 = vmatprep.subr.mxu0 0.0
    %255 = vmatpush1.msra.mxu0 %v235
    %256 = vmatprep.subr.mxu0 0.0
    %257 = vmatpush1.msra.mxu0 %v236
    %258 = vmatprep.subr.mxu0 0.0
    %259 = vmatpush1.msra.mxu0 %v237
    %260 = vmatprep.subr.mxu0 0.0
    %261 = vmatpush1.msra.mxu0 %v238
    %262 = vmatprep.subr.mxu0 0.0
    %263 = vmatpush1.msra.mxu0 %v239
    %264 = vmatprep.subr.mxu0 0.0
    %265 = vmatpush1.msra.mxu0 %v240
    %266 = vmatprep.subr.mxu0 0.0
    %267 = vmatpush1.msra.mxu0 %v241
    %268 = vmatprep.subr.mxu0 0.0
    %269 = vmatpush1.msra.mxu0 %v242
    %270 = vmatprep.subr.mxu0 0.0
    %271 = vmatpush1.msra.mxu0 %v243
    %272 = vmatprep.subr.mxu0 0.0
    %273 = vmatpush1.msra.mxu0 %v244
    %274 = vmatprep.subr.mxu0 0.0
    %275 = vmatpush1.msra.mxu0 %v245
    %276 = vmatprep.subr.mxu0 0.0
    %277 = vmatpush1.msra.mxu0 %v246
    %278 = vmatprep.subr.mxu0 0.0
    %279 = vmatpush1.msra.mxu0 %v247
    %280 = vmatprep.subr.mxu0 0.0
    %281 = vmatpush1.msra.mxu0 0.0
    %282 = vmatprep.subr.mxu0 0.0
    %283 = vmatpush1.msra.mxu0 0.0
    %284 = vmatprep.subr.mxu0 0.0
    %285 = vmatpush1.msra.mxu0 0.0
    %286 = vmatprep.subr.mxu0 0.0
    %287 = vmatpush1.msra.mxu0 0.0
    %288 = vmatprep.subr.mxu0 0.0
    %289 = vmatpush1.msra.mxu0 0.0
    %290 = vmatprep.subr.mxu0 0.0
    %291 = vmatpush1.msra.mxu0 0.0
    %292 = vmatprep.subr.mxu0 0.0
    %293 = vmatpush1.msra.mxu0 0.0
    %294 = vmatprep.subr.mxu0 0.0
    %295 = vmatpush1.msra.mxu0 0.0
    %296 = vmatprep.subr.mxu0 0.0
    %297 = vmatpush1.msra.mxu0 0.0
    %298 = vmatprep.subr.mxu0 0.0
    %299 = vmatpush1.msra.mxu0 0.0
    %300 = vmatprep.subr.mxu0 0.0
    %301 = vmatpush1.msra.mxu0 0.0
    %302 = vmatprep.subr.mxu0 0.0
    %303 = vmatpush1.msra.mxu0 0.0
    %304 = vmatprep.subr.mxu0 0.0
    %305 = vmatpush1.msra.mxu0 0.0
    %306 = vmatprep.subr.mxu0 0.0
    %307 = vmatpush1.msra.mxu0 0.0
    %308 = vmatprep.subr.mxu0 0.0
    %309 = vmatpush1.msra.mxu0 0.0
    %310 = vmatprep.subr.mxu0 0.0
    %311 = vmatpush1.msra.mxu0 0.0
    %312 = vmatprep.mubr.f32.mxu0 0.0
    %313 = vmatmul.mubr.f32.gmra.mrb[0].mxu0 %v228
    %v314 = vpop.f32.mrb[0].mxu0
    %v315 = vadd.f32 0.0, %v314
    %v316 = vpop.f32.mrb[0].mxu0
    %317 = vmatprep.mubr.f32.mxu0 0.0
    %318 = vmatmul.mubr.f32.gmra.mrb[0].mxu0 %v229
    %v319 = vpop.f32.mrb[0].mxu0
    %v320 = vadd.f32 0.0, %v319
    %v321 = vpop.f32.mrb[0].mxu0
    %322 = vdwg.mxu0
    %v323 = vadd.f32 %v230, %v315
    %v324 = vadd.f32 %v231, %v320
    %325 = vst [vmem:[#allocation2] sm:$0xff] %v323
    %326 = vst [vmem:[#allocation2 + $0x8] sm:$0xff] %v324
    // Predicated region
    $region62: #{tpu_custom_call.1} parent=1 // pred_check
      %p327 = pneg %p114
    $region63: #{tpu_custom_call.1} parent=1 // pred_check_branch
      %329 = sbr.rel (%p327) target = $region65
    $region64: #{tpu_custom_call.1} parent=1 // pred_region
      %v330 = vld [vmem:[#allocation2] sm:$0xff]
      %v331 = vld [vmem:[#allocation2 + $0x8] sm:$0xff]
      %v332 = vld [vmem:[#allocation11] sm:$0x1]
      %v334 = vlaneseq
      %v335 = vshrl.u32 %v334, 7
      %v336 = vsub.s32 0, %v335
      %v337 = vrot.slane %v332, %v336
      %v339 = vadd.f32 %v330, %v337
      %v340 = vadd.f32 %v331, %v337
      %v341 = vadd.f32 %v339, %v120
      %v342 = vadd.f32 %v340, %v121
      %343 = vadd.xlane.f32.xlu0 %v341
      %v344 = vpop.xlane.xlu0 %343
      %345 = vadd.xlane.f32.xlu0 %v342
      %v346 = vpop.xlane.xlu0 %345
      %v347 = vmul.f32 %v344, 0.03125
      %v348 = vmul.f32 %v346, 0.03125
      %v349 = vsub.f32 %v341, %v347
      %v350 = vsub.f32 %v342, %v348
      %v351 = vmul.f32 %v349, %v349
      %v352 = vmul.f32 %v350, %v350
      %353 = vadd.xlane.f32.xlu0 %v351
      %v354 = vpop.xlane.xlu0 %353
      %355 = vadd.xlane.f32.xlu0 %v352
      %v356 = vpop.xlane.xlu0 %355
      %v357 = vmul.f32 %v347, %v347
      %v358 = vmul.f32 %v348, %v348
      %v359 = vmul.f32 %v357, 96.0
      %v360 = vmul.f32 %v358, 96.0
      %v361 = vsub.f32 %v354, %v359
      %v362 = vsub.f32 %v356, %v360
      %v363 = vmul.f32 %v361, 0.03125
      %v364 = vmul.f32 %v362, 0.03125
      %v365 = vadd.f32 %v363, 1e-05
      %v366 = vadd.f32 %v364, 1e-05
      %v367 = vrsqrt.pop %v365
      %v368 = vrsqrt.pop %v366
      %v369 = vmul.f32 %v349, %v367
      %v370 = vmul.f32 %v350, %v368
      %v371 = vld [vmem:[#allocation12] sm:$0x1]
      %v373 = vlaneseq
      %v374 = vshrl.u32 %v373, 7
      %v375 = vsub.s32 0, %v374
      %v376 = vrot.slane %v371, %v375
      %v378 = vmul.f32 %v369, %v376
      %v379 = vmul.f32 %v370, %v376
      %v380 = vld [vmem:[#allocation14] sm:$0x1]
      %v382 = vlaneseq
      %v383 = vshrl.u32 %v382, 7
      %v384 = vsub.s32 0, %v383
      %v385 = vrot.slane %v380, %v384
      %v387 = vadd.f32 %v378, %v385
      %v388 = vadd.f32 %v379, %v385
      %389 = vst [vmem:[#allocation15] sm:$0xff] %v387
      %390 = vst [vmem:[#allocation15 + $0x8] sm:$0xff] %v388
    $region65: #{tpu_custom_call.1} parent=1 // pred_fallthru
      _
    // Predicated region
    $region66: #{tpu_custom_call.1} parent=1 // pred_check
      _
    $region67: #{tpu_custom_call.1} parent=1 // pred_check_branch
      %392 = sbr.rel (0) target = $region69
    $region68: #{tpu_custom_call.1} parent=1 // pred_region
      %s394 = ssub.s32 256, 256
      %395 = vsyncadd [#allocation5], %s394
      %s396 = sshll.u32 [#allocation15], 4
      %s397 = int_to_ptr.vmem [resolvable:$true] %s396
      %402 = dma.vmem_to_hbm [thread:$0]  %s397, 256, %s7, [#allocation5], 128, 128, 8
    $region69: #{tpu_custom_call.1} parent=1 // pred_fallthru
      _
    // Predicated region
    $region70: #{tpu_custom_call.1} parent=1 // pred_check
      _
    $region71: #{tpu_custom_call.1} parent=1 // pred_check_branch
      %404 = sbr.rel (0) target = $region73
    $region72: #{tpu_custom_call.1} parent=1 // pred_region
      %405 = dma.done [#allocation5], 256
    $region73: #{tpu_custom_call.1} parent=1 // pred_fallthru
      _
    %406 = vsyncpa [#allocation4], 1
    %407 = vsyncpa [#allocation7], 1
    %408 = vsyncpa [#allocation10], 1
    %409 = vsyncpa [#allocation13], 1
    %410 = vsyncpa [#allocation5], 1

</llo_original>
